<compile_context>
chip_gen: v7x
topology: tpu7x:2x2x1
jax: 0.10.0
libtpu: 0.0.40
codegen_flags: <defaults>
</compile_context>

<pallas_src>
import functools
import math

import numpy as np
import jax
import jax.numpy as jnp
from jax.experimental import pallas as pl
from jax.experimental.pallas import tpu as pltpu

EPS = 1e-5


# ------------------------------ fused kernel --------------------------------

def _resnet1d_kernel(x_ref, w_ref, b_ref, pool_ref, o_ref, *, slot):
    """Whole ResNet1D forward for TB samples laid side-by-side on lanes.

    Layouts (per grid step):
      x_ref    : (1, Cin, TB*slot)   channels on sublanes, batch*length on lanes
      w_ref    : (6, Cout, 3*Cout)   BN-folded conv weights, taps stacked on K
      b_ref    : (6, Cout, 1)        BN-folded biases
      pool_ref : (TB*slot, TB)       per-sample mean-pool matrix (valid lanes only)
      o_ref    : (1, Cout, TB)

    Downsampled activations stay "in place": after a stride-2 stage the logical
    signal lives on every 2nd (then 4th) lane of its sample slot, so stride-2
    convs / 1x1 downsample / maxpool need no lane compaction.  Conv taps are
    XLU rolls + VPU boundary masks; each conv is exactly ONE MXU dot.
    """
    f32 = jnp.float32

    def conv3_bn(h, wk, bk, s, llog):
        # Conv1d(k=3, stride=1, pad=1) + folded BN on a stride-`s` lane
        # representation of a logical length-`llog` signal, as one MXU dot.
        c, lanes = h.shape
        pos = jax.lax.broadcasted_iota(jnp.int32, h.shape, 1) % slot
        left = jnp.where(pos >= s, pltpu.roll(h, s, axis=1), 0.0)              # tap k=0: x[l-1]
        right = jnp.where(pos < (llog - 1) * s,
                          pltpu.roll(h, lanes - s, axis=1), 0.0)               # tap k=2: x[l+1]
        cols = jnp.concatenate([left, h, right], axis=0)                       # (3C, lanes)
        return jnp.dot(wk[:, :3 * c], cols, preferred_element_type=f32) + bk

    cout = o_ref.shape[1]
    x = x_ref[0].astype(f32)                                                   # (Cin, TB*slot)

    # --- stem: conv1(k3,s1,p1) -> BN -> ReLU  (stride-1 rep, llog = slot) ----
    y = jnp.maximum(conv3_bn(x, w_ref[0], b_ref[0], 1, slot), 0.0)

    # --- maxpool(k=2,s=2): max(h[2k], h[2k+1]); valid on even lanes ----------
    y = jnp.maximum(y, pltpu.roll(y, y.shape[1] - 1, axis=1))                  # stride-2 rep

    # --- layer1: BasicBlock(stride=1), identity shortcut ---------------------
    h = jnp.maximum(conv3_bn(y, w_ref[1], b_ref[1], 2, slot // 2), 0.0)
    y = jnp.maximum(conv3_bn(h, w_ref[2], b_ref[2], 2, slot // 2) + y, 0.0)

    # --- layer2: BasicBlock(stride=2) + downsample (1x1 conv s=2 + BN) -------
    # Stride-2 outputs land on every 4th lane; no lane-selection matmul needed.
    ident = jnp.dot(w_ref[5][:, :cout], y, preferred_element_type=f32) + b_ref[5]
    h = jnp.maximum(conv3_bn(y, w_ref[3], b_ref[3], 2, slot // 2), 0.0)        # stride-4 rep
    y = jnp.maximum(conv3_bn(h, w_ref[4], b_ref[4], 4, slot // 4) + ident, 0.0)

    # --- finalPool1d('mean'): per-sample mean over the slot//4 valid lanes,
    #     as one dot with a 0/(1/LF) matrix -> lane-dense (Cout, TB) output ---
    o_ref[...] = jnp.dot(y, pool_ref[...],
                         preferred_element_type=f32)[None].astype(o_ref.dtype)
    # TODO(synk): nn.Dropout(p=0.5) is identity in eval mode; training-mode
    # Bernoulli masking (pltpu.prng_*) is omitted.


# --------------------------- host-side preparation ---------------------------

def _fold_conv_bn(w, bn):
    """w: (Cout, Cin, K) conv weight -> (Cout, K*Cin) with BN folded, + bias."""
    gamma, beta, mean, var = bn
    scale = gamma / jnp.sqrt(var + EPS)                       # (Cout,)
    cout, cin, k = w.shape
    wmat = jnp.transpose(w, (0, 2, 1)).reshape(cout, k * cin) * scale[:, None]
    bias = (beta - mean * scale)[:, None]                     # (Cout, 1)
    return wmat, bias


def pack_params(params):
    """Fold BN into conv weights and stack.  One-time host work (hoisted out
    of the jitted forward)."""
    cout = params["conv1_w"].shape[0]
    order = [("conv1_w", "bn1"), ("l1_conv1_w", "l1_bn1"), ("l1_conv2_w", "l1_bn2"),
             ("l2_conv1_w", "l2_bn1"), ("l2_conv2_w", "l2_bn2"), ("l2_ds_w", "l2_ds_bn")]
    kmax = 3 * cout
    ws, bs = [], []
    for wname, bname in order:
        wmat, bias = _fold_conv_bn(params[wname], params[bname])
        ws.append(jnp.pad(wmat, ((0, 0), (0, kmax - wmat.shape[1]))))
        bs.append(bias)
    return jnp.stack(ws), jnp.stack(bs)          # (6, cout, 3*cout), (6, cout, 1)


def _pool_matrix(tb, slot):
    """(tb*slot, tb): column b averages sample b's slot//4 valid (stride-4) lanes."""
    lf = slot // 4
    s = np.zeros((tb * slot, tb), np.float32)
    for b in range(tb):
        s[b * slot + 4 * np.arange(lf), b] = 1.0 / lf
    return jnp.asarray(s)


def make_resnet1d_forward(n, cin, cout, length):
    """Builds a jitted forward for fixed shapes; all constant prep is hoisted here."""
    assert length % 4 == 0, "network downsamples the length by 4"
    tb = max(1, min(128 // length, n))           # samples per grid step (~128 lanes)
    steps = -(-n // tb)
    if steps == 1 and tb > 1:                    # keep >=2 'parallel' steps (v7x: 2 TCs)
        tb = -(-n // 2)
        steps = -(-n // tb)
    lanes = tb * length
    pool = _pool_matrix(tb, length)              # embedded as a jit constant
    kernel = functools.partial(_resnet1d_kernel, slot=length)

    flops = steps * (2 * lanes * (cout * 3 * cin + 4 * cout * 3 * cout + cout * cout)
                     + 2 * cout * lanes * tb)
    bytes_accessed = 4 * (steps * cin * lanes + 6 * cout * (3 * cout + 1)
                          + lanes * tb + steps * cout * tb)

    @jax.jit
    def forward(wpack, bpack, x):
        pad = steps * tb - x.shape[0]
        xp = jnp.pad(x, ((0, pad), (0, 0), (0, 0))) if pad else x
        # (steps*tb, Cin, L) -> (steps, Cin, tb*L): batch folded onto the lane axis
        xr = xp.reshape(steps, tb, cin, length).transpose(0, 2, 1, 3).reshape(
            steps, cin, lanes)
        out = pl.pallas_call(
            kernel,
            grid=(steps,),
            in_specs=[
                pl.BlockSpec((1, cin, lanes), lambda g: (g, 0, 0)),
                pl.BlockSpec((6, cout, 3 * cout), lambda g: (0, 0, 0)),
                pl.BlockSpec((6, cout, 1), lambda g: (0, 0, 0)),
                pl.BlockSpec((lanes, tb), lambda g: (0, 0)),
            ],
            out_specs=pl.BlockSpec((1, cout, tb), lambda g: (g, 0, 0)),
            out_shape=jax.ShapeDtypeStruct((steps, cout, tb), jnp.float32),
            compiler_params=pltpu.CompilerParams(
                dimension_semantics=("parallel",)),
            cost_estimate=pl.CostEstimate(flops=flops, transcendentals=0,
                                          bytes_accessed=bytes_accessed),
        )(xr, wpack, bpack, pool)
        # (steps, Cout, tb) -> (N, Cout): wrapper-side layout plumbing only.
        return out.transpose(0, 2, 1).reshape(steps * tb, cout)[:n]

    return forward


# ------------------------------- parameters ----------------------------------

def _conv_weight(key, cout, cin, k):
    # PyTorch init: normal(0, sqrt(2 / (kernel_size * out_channels))), layout (Cout, Cin, K).
    std = math.sqrt(2.0 / (k * cout))
    return jax.random.normal(key, (cout, cin, k), jnp.float32) * std


def _bn_params(c):
    # (gamma, beta, running_mean, running_var) — inference defaults.
    return (jnp.ones((c,), jnp.float32), jnp.zeros((c,), jnp.float32),
            jnp.zeros((c,), jnp.float32), jnp.ones((c,), jnp.float32))


def init_params(key, in_channels, out_channels):
    ks = jax.random.split(key, 6)
    return {
        # stem
        "conv1_w": _conv_weight(ks[0], out_channels, in_channels, 3),
        "bn1": _bn_params(out_channels),
        # layer1: one BasicBlock, stride 1, identity shortcut
        "l1_conv1_w": _conv_weight(ks[1], out_channels, out_channels, 3),
        "l1_bn1": _bn_params(out_channels),
        "l1_conv2_w": _conv_weight(ks[2], out_channels, out_channels, 3),
        "l1_bn2": _bn_params(out_channels),
        # layer2: one BasicBlock, stride 2, 1x1/stride-2 downsample shortcut
        "l2_conv1_w": _conv_weight(ks[3], out_channels, out_channels, 3),
        "l2_bn1": _bn_params(out_channels),
        "l2_conv2_w": _conv_weight(ks[4], out_channels, out_channels, 3),
        "l2_bn2": _bn_params(out_channels),
        "l2_ds_w": _conv_weight(ks[5], out_channels, out_channels, 1),
        "l2_ds_bn": _bn_params(out_channels),
    }


# ------------------------- pure-JAX reference (check) ------------------------

def _reference_forward(params, x):
    def conv(x, w, stride=1, pad=1):
        return jax.lax.conv_general_dilated(
            x, w, window_strides=(stride,), padding=[(pad, pad)],
            dimension_numbers=("NCH", "OIH", "NCH"))

    def bn(x, p):
        g, b, m, v = p
        inv = g / jnp.sqrt(v + EPS)
        return x * inv[None, :, None] + (b - m * inv)[None, :, None]

    y = jax.nn.relu(bn(conv(x, params["conv1_w"]), params["bn1"]))
    n, c, l = y.shape
    y = jnp.max(y.reshape(n, c, l // 2, 2), axis=-1)                 # MaxPool1d(2,2)
    h = jax.nn.relu(bn(conv(y, params["l1_conv1_w"]), params["l1_bn1"]))
    y = jax.nn.relu(bn(conv(h, params["l1_conv2_w"]), params["l1_bn2"]) + y)
    ident = bn(conv(y, params["l2_ds_w"], stride=2, pad=0), params["l2_ds_bn"])
    h = jax.nn.relu(bn(conv(y, params["l2_conv1_w"], stride=2), params["l2_bn1"]))
    y = jax.nn.relu(bn(conv(h, params["l2_conv2_w"]), params["l2_bn2"]) + ident)
    return jnp.mean(y, axis=-1)


if __name__ == "__main__":
    key = jax.random.PRNGKey(0)
    k_params, k_x = jax.random.split(key)

    N, C_IN, C_OUT, L = 2, 4, 8, 16
    params = init_params(k_params, C_IN, C_OUT)
    x = jax.random.normal(k_x, (N, C_IN, L), jnp.float32)

    wpack, bpack = pack_params(params)                 # one-time, outside hot path
    forward = make_resnet1d_forward(N, C_IN, C_OUT, L)

    out = jax.block_until_ready(forward(wpack, bpack, x))
    assert out.shape == (N, C_OUT), out.shape
    assert bool(jnp.all(jnp.isfinite(out)))

    ref = _reference_forward(params, x)
    assert bool(jnp.allclose(out, ref, atol=5e-2, rtol=5e-2)), \
        float(jnp.max(jnp.abs(out - ref)))
    print("KERNEL_OK")
</pallas_src>

<mosaic_0001>
module attributes {stable_mosaic.version = 11 : i64} {
  func.func @_resnet1d_kernel(%arg0: i32, %arg1: memref<1x4x16xf32, #tpu.memory_space<vmem>>, %arg2: memref<6x8x24xf32, #tpu.memory_space<vmem>>, %arg3: memref<6x8x1xf32, #tpu.memory_space<vmem>>, %arg4: memref<16x1xf32, #tpu.memory_space<vmem>>, %arg5: memref<1x8x1xf32, #tpu.memory_space<vmem>>) attributes {dimension_semantics = [#tpu.dimension_semantics<parallel>], iteration_bounds = array<i64: 2>, scalar_prefetch = 0 : i64, scratch_operands = 0 : i64, tpu.core_type = #tpu.core_type<tc>, window_params = [{transform_indices = @transform_0, window_bounds = array<i64: 1, 4, 16>}, {pipeline_mode = #tpu.pipeline_mode<synchronous>, transform_indices = @transform_1, window_bounds = array<i64: 6, 8, 24>}, {pipeline_mode = #tpu.pipeline_mode<synchronous>, transform_indices = @transform_2, window_bounds = array<i64: 6, 8, 1>}, {pipeline_mode = #tpu.pipeline_mode<synchronous>, transform_indices = @transform_3, window_bounds = array<i64: 16, 1>}, {transform_indices = @transform_4, window_bounds = array<i64: 1, 8, 1>}]} {
    %c0 = arith.constant 0 : index
    %c0_0 = arith.constant 0 : index
    %c0_1 = arith.constant 0 : index
    %0 = vector.load %arg1[%c0, %c0_0, %c0_1] : memref<1x4x16xf32, #tpu.memory_space<vmem>>, vector<1x4x16xf32>
    %1 = vector.shape_cast %0 : vector<1x4x16xf32> to vector<4x16xf32>
    %c0_2 = arith.constant 0 : index
    %c0_3 = arith.constant 0 : index
    %c0_4 = arith.constant 0 : index
    %2 = vector.load %arg2[%c0_2, %c0_3, %c0_4] : memref<6x8x24xf32, #tpu.memory_space<vmem>>, vector<1x8x24xf32>
    %3 = vector.shape_cast %2 : vector<1x8x24xf32> to vector<8x24xf32>
    %c0_5 = arith.constant 0 : index
    %c0_6 = arith.constant 0 : index
    %c0_7 = arith.constant 0 : index
    %4 = vector.load %arg3[%c0_5, %c0_6, %c0_7] : memref<6x8x1xf32, #tpu.memory_space<vmem>>, vector<1x8x1xf32>
    %5 = vector.shape_cast %4 : vector<1x8x1xf32> to vector<8x1xf32>
    %6 = tpu.iota {dimensions = array<i32: 1>} : vector<4x16xi32>
    %c16_i32 = arith.constant 16 : i32
    %c0_i32 = arith.constant 0 : i32
    %7 = arith.cmpi eq, %c16_i32, %c0_i32 : i32
    %c1_i32 = arith.constant 1 : i32
    %8 = arith.select %7, %c1_i32, %c16_i32 : i32
    %9 = vector.broadcast %8 : i32 to vector<4x16xi32>
    %10 = arith.remsi %6, %9 : vector<4x16xi32>
    %c0_i32_8 = arith.constant 0 : i32
    %11 = vector.broadcast %c0_i32_8 : i32 to vector<4x16xi32>
    %12 = arith.cmpi ne, %10, %11 : vector<4x16xi32>
    %c0_i32_9 = arith.constant 0 : i32
    %13 = vector.broadcast %c0_i32_9 : i32 to vector<4x16xi32>
    %14 = arith.cmpi slt, %10, %13 : vector<4x16xi32>
    %c0_i32_10 = arith.constant 0 : i32
    %15 = arith.cmpi slt, %8, %c0_i32_10 : i32
    %16 = vector.broadcast %15 : i1 to vector<4x16xi1>
    %17 = vector.broadcast %16 : vector<4x16xi1> to vector<4x16xi1>
    %18 = arith.xori %14, %17 : vector<4x16xi1>
    %19 = arith.andi %18, %12 : vector<4x16xi1>
    %20 = vector.broadcast %8 : i32 to vector<4x16xi32>
    %21 = arith.addi %10, %20 : vector<4x16xi32>
    %22 = arith.select %19, %21, %10 : vector<4x16xi1>, vector<4x16xi32>
    %c1_i32_11 = arith.constant 1 : i32
    %23 = vector.broadcast %c1_i32_11 : i32 to vector<4x16xi32>
    %24 = arith.cmpi sge, %22, %23 : vector<4x16xi32>
    %c1_i32_12 = arith.constant 1 : i32
    %25 = tpu.dynamic_rotate %1 by %c1_i32_12 dim 1 : vector<4x16xf32>, i32 -> vector<4x16xf32>
    %cst = arith.constant 0.000000e+00 : f32
    %26 = vector.broadcast %cst : f32 to vector<4x16xf32>
    %27 = arith.select %24, %25, %26 : vector<4x16xi1>, vector<4x16xf32>
    %c15_i32 = arith.constant 15 : i32
    %28 = vector.broadcast %c15_i32 : i32 to vector<4x16xi32>
    %29 = arith.cmpi slt, %22, %28 : vector<4x16xi32>
    %c15_i32_13 = arith.constant 15 : i32
    %30 = tpu.dynamic_rotate %1 by %c15_i32_13 dim 1 : vector<4x16xf32>, i32 -> vector<4x16xf32>
    %cst_14 = arith.constant 0.000000e+00 : f32
    %31 = vector.broadcast %cst_14 : f32 to vector<4x16xf32>
    %32 = arith.select %29, %30, %31 : vector<4x16xi1>, vector<4x16xf32>
    %33 = tpu.concatenate %27, %1, %32 in 0 : vector<4x16xf32>, vector<4x16xf32>, vector<4x16xf32> -> vector<12x16xf32>
    %34 = vector.extract_strided_slice %3 {offsets = [0, 0], sizes = [8, 12], strides = [1, 1]} : vector<8x24xf32> to vector<8x12xf32>
    %cst_15 = arith.constant dense<0.000000e+00> : vector<8x16xf32>
    %35 = tpu.matmul %34, %33, %cst_15 {dimension_numbers = #tpu.dot_dimension_numbers<[1], [0], [0], [1], [0, 0, 1, 1], [], []>} : vector<8x12xf32>, vector<12x16xf32>, vector<8x16xf32> -> vector<8x16xf32>
    %36 = vector.broadcast %5 : vector<8x1xf32> to vector<8x16xf32>
    %37 = arith.addf %35, %36 : vector<8x16xf32>
    %cst_16 = arith.constant 0.000000e+00 : f32
    %38 = vector.broadcast %cst_16 : f32 to vector<8x16xf32>
    %39 = arith.maximumf %37, %38 : vector<8x16xf32>
    %c15_i32_17 = arith.constant 15 : i32
    %40 = tpu.dynamic_rotate %39 by %c15_i32_17 dim 1 : vector<8x16xf32>, i32 -> vector<8x16xf32>
    %41 = arith.maximumf %39, %40 : vector<8x16xf32>
    %c1 = arith.constant 1 : index
    %c0_18 = arith.constant 0 : index
    %c0_19 = arith.constant 0 : index
    %42 = vector.load %arg2[%c1, %c0_18, %c0_19] : memref<6x8x24xf32, #tpu.memory_space<vmem>>, vector<1x8x24xf32>
    %43 = vector.shape_cast %42 : vector<1x8x24xf32> to vector<8x24xf32>
    %c1_20 = arith.constant 1 : index
    %c0_21 = arith.constant 0 : index
    %c0_22 = arith.constant 0 : index
    %44 = vector.load %arg3[%c1_20, %c0_21, %c0_22] : memref<6x8x1xf32, #tpu.memory_space<vmem>>, vector<1x8x1xf32>
    %45 = vector.shape_cast %44 : vector<1x8x1xf32> to vector<8x1xf32>
    %46 = tpu.iota {dimensions = array<i32: 1>} : vector<8x16xi32>
    %c16_i32_23 = arith.constant 16 : i32
    %c0_i32_24 = arith.constant 0 : i32
    %47 = arith.cmpi eq, %c16_i32_23, %c0_i32_24 : i32
    %c1_i32_25 = arith.constant 1 : i32
    %48 = arith.select %47, %c1_i32_25, %c16_i32_23 : i32
    %49 = vector.broadcast %48 : i32 to vector<8x16xi32>
    %50 = arith.remsi %46, %49 : vector<8x16xi32>
    %c0_i32_26 = arith.constant 0 : i32
    %51 = vector.broadcast %c0_i32_26 : i32 to vector<8x16xi32>
    %52 = arith.cmpi ne, %50, %51 : vector<8x16xi32>
    %c0_i32_27 = arith.constant 0 : i32
    %53 = vector.broadcast %c0_i32_27 : i32 to vector<8x16xi32>
    %54 = arith.cmpi slt, %50, %53 : vector<8x16xi32>
    %c0_i32_28 = arith.constant 0 : i32
    %55 = arith.cmpi slt, %48, %c0_i32_28 : i32
    %56 = vector.broadcast %55 : i1 to vector<8x16xi1>
    %57 = vector.broadcast %56 : vector<8x16xi1> to vector<8x16xi1>
    %58 = arith.xori %54, %57 : vector<8x16xi1>
    %59 = arith.andi %58, %52 : vector<8x16xi1>
    %60 = vector.broadcast %48 : i32 to vector<8x16xi32>
    %61 = arith.addi %50, %60 : vector<8x16xi32>
    %62 = arith.select %59, %61, %50 : vector<8x16xi1>, vector<8x16xi32>
    %c2_i32 = arith.constant 2 : i32
    %63 = vector.broadcast %c2_i32 : i32 to vector<8x16xi32>
    %64 = arith.cmpi sge, %62, %63 : vector<8x16xi32>
    %c2_i32_29 = arith.constant 2 : i32
    %65 = tpu.dynamic_rotate %41 by %c2_i32_29 dim 1 : vector<8x16xf32>, i32 -> vector<8x16xf32>
    %cst_30 = arith.constant 0.000000e+00 : f32
    %66 = vector.broadcast %cst_30 : f32 to vector<8x16xf32>
    %67 = arith.select %64, %65, %66 : vector<8x16xi1>, vector<8x16xf32>
    %c14_i32 = arith.constant 14 : i32
    %68 = vector.broadcast %c14_i32 : i32 to vector<8x16xi32>
    %69 = arith.cmpi slt, %62, %68 : vector<8x16xi32>
    %c14_i32_31 = arith.constant 14 : i32
    %70 = tpu.dynamic_rotate %41 by %c14_i32_31 dim 1 : vector<8x16xf32>, i32 -> vector<8x16xf32>
    %cst_32 = arith.constant 0.000000e+00 : f32
    %71 = vector.broadcast %cst_32 : f32 to vector<8x16xf32>
    %72 = arith.select %69, %70, %71 : vector<8x16xi1>, vector<8x16xf32>
    %73 = tpu.concatenate %67, %41, %72 in 0 : vector<8x16xf32>, vector<8x16xf32>, vector<8x16xf32> -> vector<24x16xf32>
    %cst_33 = arith.constant dense<0.000000e+00> : vector<8x16xf32>
    %74 = tpu.matmul %43, %73, %cst_33 {dimension_numbers = #tpu.dot_dimension_numbers<[1], [0], [0], [1], [0, 0, 1, 1], [], []>} : vector<8x24xf32>, vector<24x16xf32>, vector<8x16xf32> -> vector<8x16xf32>
    %75 = vector.broadcast %45 : vector<8x1xf32> to vector<8x16xf32>
    %76 = arith.addf %74, %75 : vector<8x16xf32>
    %cst_34 = arith.constant 0.000000e+00 : f32
    %77 = vector.broadcast %cst_34 : f32 to vector<8x16xf32>
    %78 = arith.maximumf %76, %77 : vector<8x16xf32>
    %c2 = arith.constant 2 : index
    %c0_35 = arith.constant 0 : index
    %c0_36 = arith.constant 0 : index
    %79 = vector.load %arg2[%c2, %c0_35, %c0_36] : memref<6x8x24xf32, #tpu.memory_space<vmem>>, vector<1x8x24xf32>
    %80 = vector.shape_cast %79 : vector<1x8x24xf32> to vector<8x24xf32>
    %c2_37 = arith.constant 2 : index
    %c0_38 = arith.constant 0 : index
    %c0_39 = arith.constant 0 : index
    %81 = vector.load %arg3[%c2_37, %c0_38, %c0_39] : memref<6x8x1xf32, #tpu.memory_space<vmem>>, vector<1x8x1xf32>
    %82 = vector.shape_cast %81 : vector<1x8x1xf32> to vector<8x1xf32>
    %83 = tpu.iota {dimensions = array<i32: 1>} : vector<8x16xi32>
    %c16_i32_40 = arith.constant 16 : i32
    %c0_i32_41 = arith.constant 0 : i32
    %84 = arith.cmpi eq, %c16_i32_40, %c0_i32_41 : i32
    %c1_i32_42 = arith.constant 1 : i32
    %85 = arith.select %84, %c1_i32_42, %c16_i32_40 : i32
    %86 = vector.broadcast %85 : i32 to vector<8x16xi32>
    %87 = arith.remsi %83, %86 : vector<8x16xi32>
    %c0_i32_43 = arith.constant 0 : i32
    %88 = vector.broadcast %c0_i32_43 : i32 to vector<8x16xi32>
    %89 = arith.cmpi ne, %87, %88 : vector<8x16xi32>
    %c0_i32_44 = arith.constant 0 : i32
    %90 = vector.broadcast %c0_i32_44 : i32 to vector<8x16xi32>
    %91 = arith.cmpi slt, %87, %90 : vector<8x16xi32>
    %c0_i32_45 = arith.constant 0 : i32
    %92 = arith.cmpi slt, %85, %c0_i32_45 : i32
    %93 = vector.broadcast %92 : i1 to vector<8x16xi1>
    %94 = vector.broadcast %93 : vector<8x16xi1> to vector<8x16xi1>
    %95 = arith.xori %91, %94 : vector<8x16xi1>
    %96 = arith.andi %95, %89 : vector<8x16xi1>
    %97 = vector.broadcast %85 : i32 to vector<8x16xi32>
    %98 = arith.addi %87, %97 : vector<8x16xi32>
    %99 = arith.select %96, %98, %87 : vector<8x16xi1>, vector<8x16xi32>
    %c2_i32_46 = arith.constant 2 : i32
    %100 = vector.broadcast %c2_i32_46 : i32 to vector<8x16xi32>
    %101 = arith.cmpi sge, %99, %100 : vector<8x16xi32>
    %c2_i32_47 = arith.constant 2 : i32
    %102 = tpu.dynamic_rotate %78 by %c2_i32_47 dim 1 : vector<8x16xf32>, i32 -> vector<8x16xf32>
    %cst_48 = arith.constant 0.000000e+00 : f32
    %103 = vector.broadcast %cst_48 : f32 to vector<8x16xf32>
    %104 = arith.select %101, %102, %103 : vector<8x16xi1>, vector<8x16xf32>
    %c14_i32_49 = arith.constant 14 : i32
    %105 = vector.broadcast %c14_i32_49 : i32 to vector<8x16xi32>
    %106 = arith.cmpi slt, %99, %105 : vector<8x16xi32>
    %c14_i32_50 = arith.constant 14 : i32
    %107 = tpu.dynamic_rotate %78 by %c14_i32_50 dim 1 : vector<8x16xf32>, i32 -> vector<8x16xf32>
    %cst_51 = arith.constant 0.000000e+00 : f32
    %108 = vector.broadcast %cst_51 : f32 to vector<8x16xf32>
    %109 = arith.select %106, %107, %108 : vector<8x16xi1>, vector<8x16xf32>
    %110 = tpu.concatenate %104, %78, %109 in 0 : vector<8x16xf32>, vector<8x16xf32>, vector<8x16xf32> -> vector<24x16xf32>
    %cst_52 = arith.constant dense<0.000000e+00> : vector<8x16xf32>
    %111 = tpu.matmul %80, %110, %cst_52 {dimension_numbers = #tpu.dot_dimension_numbers<[1], [0], [0], [1], [0, 0, 1, 1], [], []>} : vector<8x24xf32>, vector<24x16xf32>, vector<8x16xf32> -> vector<8x16xf32>
    %112 = vector.broadcast %82 : vector<8x1xf32> to vector<8x16xf32>
    %113 = arith.addf %111, %112 : vector<8x16xf32>
    %114 = arith.addf %113, %41 : vector<8x16xf32>
    %cst_53 = arith.constant 0.000000e+00 : f32
    %115 = vector.broadcast %cst_53 : f32 to vector<8x16xf32>
    %116 = arith.maximumf %114, %115 : vector<8x16xf32>
    %c5 = arith.constant 5 : index
    %c0_54 = arith.constant 0 : index
    %c0_55 = arith.constant 0 : index
    %117 = vector.load %arg2[%c5, %c0_54, %c0_55] : memref<6x8x24xf32, #tpu.memory_space<vmem>>, vector<1x8x24xf32>
    %118 = vector.shape_cast %117 : vector<1x8x24xf32> to vector<8x24xf32>
    %119 = vector.extract_strided_slice %118 {offsets = [0, 0], sizes = [8, 8], strides = [1, 1]} : vector<8x24xf32> to vector<8x8xf32>
    %cst_56 = arith.constant dense<0.000000e+00> : vector<8x16xf32>
    %120 = tpu.matmul %119, %116, %cst_56 {dimension_numbers = #tpu.dot_dimension_numbers<[1], [0], [0], [1], [0, 0, 1, 1], [], []>} : vector<8x8xf32>, vector<8x16xf32>, vector<8x16xf32> -> vector<8x16xf32>
    %c5_57 = arith.constant 5 : index
    %c0_58 = arith.constant 0 : index
    %c0_59 = arith.constant 0 : index
    %121 = vector.load %arg3[%c5_57, %c0_58, %c0_59] : memref<6x8x1xf32, #tpu.memory_space<vmem>>, vector<1x8x1xf32>
    %122 = vector.shape_cast %121 : vector<1x8x1xf32> to vector<8x1xf32>
    %123 = vector.broadcast %122 : vector<8x1xf32> to vector<8x16xf32>
    %124 = arith.addf %120, %123 : vector<8x16xf32>
    %c3 = arith.constant 3 : index
    %c0_60 = arith.constant 0 : index
    %c0_61 = arith.constant 0 : index
    %125 = vector.load %arg2[%c3, %c0_60, %c0_61] : memref<6x8x24xf32, #tpu.memory_space<vmem>>, vector<1x8x24xf32>
    %126 = vector.shape_cast %125 : vector<1x8x24xf32> to vector<8x24xf32>
    %c3_62 = arith.constant 3 : index
    %c0_63 = arith.constant 0 : index
    %c0_64 = arith.constant 0 : index
    %127 = vector.load %arg3[%c3_62, %c0_63, %c0_64] : memref<6x8x1xf32, #tpu.memory_space<vmem>>, vector<1x8x1xf32>
    %128 = vector.shape_cast %127 : vector<1x8x1xf32> to vector<8x1xf32>
    %129 = tpu.iota {dimensions = array<i32: 1>} : vector<8x16xi32>
    %c16_i32_65 = arith.constant 16 : i32
    %c0_i32_66 = arith.constant 0 : i32
    %130 = arith.cmpi eq, %c16_i32_65, %c0_i32_66 : i32
    %c1_i32_67 = arith.constant 1 : i32
    %131 = arith.select %130, %c1_i32_67, %c16_i32_65 : i32
    %132 = vector.broadcast %131 : i32 to vector<8x16xi32>
    %133 = arith.remsi %129, %132 : vector<8x16xi32>
    %c0_i32_68 = arith.constant 0 : i32
    %134 = vector.broadcast %c0_i32_68 : i32 to vector<8x16xi32>
    %135 = arith.cmpi ne, %133, %134 : vector<8x16xi32>
    %c0_i32_69 = arith.constant 0 : i32
    %136 = vector.broadcast %c0_i32_69 : i32 to vector<8x16xi32>
    %137 = arith.cmpi slt, %133, %136 : vector<8x16xi32>
    %c0_i32_70 = arith.constant 0 : i32
    %138 = arith.cmpi slt, %131, %c0_i32_70 : i32
    %139 = vector.broadcast %138 : i1 to vector<8x16xi1>
    %140 = vector.broadcast %139 : vector<8x16xi1> to vector<8x16xi1>
    %141 = arith.xori %137, %140 : vector<8x16xi1>
    %142 = arith.andi %141, %135 : vector<8x16xi1>
    %143 = vector.broadcast %131 : i32 to vector<8x16xi32>
    %144 = arith.addi %133, %143 : vector<8x16xi32>
    %145 = arith.select %142, %144, %133 : vector<8x16xi1>, vector<8x16xi32>
    %c2_i32_71 = arith.constant 2 : i32
    %146 = vector.broadcast %c2_i32_71 : i32 to vector<8x16xi32>
    %147 = arith.cmpi sge, %145, %146 : vector<8x16xi32>
    %c2_i32_72 = arith.constant 2 : i32
    %148 = tpu.dynamic_rotate %116 by %c2_i32_72 dim 1 : vector<8x16xf32>, i32 -> vector<8x16xf32>
    %cst_73 = arith.constant 0.000000e+00 : f32
    %149 = vector.broadcast %cst_73 : f32 to vector<8x16xf32>
    %150 = arith.select %147, %148, %149 : vector<8x16xi1>, vector<8x16xf32>
    %c14_i32_74 = arith.constant 14 : i32
    %151 = vector.broadcast %c14_i32_74 : i32 to vector<8x16xi32>
    %152 = arith.cmpi slt, %145, %151 : vector<8x16xi32>
    %c14_i32_75 = arith.constant 14 : i32
    %153 = tpu.dynamic_rotate %116 by %c14_i32_75 dim 1 : vector<8x16xf32>, i32 -> vector<8x16xf32>
    %cst_76 = arith.constant 0.000000e+00 : f32
    %154 = vector.broadcast %cst_76 : f32 to vector<8x16xf32>
    %155 = arith.select %152, %153, %154 : vector<8x16xi1>, vector<8x16xf32>
    %156 = tpu.concatenate %150, %116, %155 in 0 : vector<8x16xf32>, vector<8x16xf32>, vector<8x16xf32> -> vector<24x16xf32>
    %cst_77 = arith.constant dense<0.000000e+00> : vector<8x16xf32>
    %157 = tpu.matmul %126, %156, %cst_77 {dimension_numbers = #tpu.dot_dimension_numbers<[1], [0], [0], [1], [0, 0, 1, 1], [], []>} : vector<8x24xf32>, vector<24x16xf32>, vector<8x16xf32> -> vector<8x16xf32>
    %158 = vector.broadcast %128 : vector<8x1xf32> to vector<8x16xf32>
    %159 = arith.addf %157, %158 : vector<8x16xf32>
    %cst_78 = arith.constant 0.000000e+00 : f32
    %160 = vector.broadcast %cst_78 : f32 to vector<8x16xf32>
    %161 = arith.maximumf %159, %160 : vector<8x16xf32>
    %c4 = arith.constant 4 : index
    %c0_79 = arith.constant 0 : index
    %c0_80 = arith.constant 0 : index
    %162 = vector.load %arg2[%c4, %c0_79, %c0_80] : memref<6x8x24xf32, #tpu.memory_space<vmem>>, vector<1x8x24xf32>
    %163 = vector.shape_cast %162 : vector<1x8x24xf32> to vector<8x24xf32>
    %c4_81 = arith.constant 4 : index
    %c0_82 = arith.constant 0 : index
    %c0_83 = arith.constant 0 : index
    %164 = vector.load %arg3[%c4_81, %c0_82, %c0_83] : memref<6x8x1xf32, #tpu.memory_space<vmem>>, vector<1x8x1xf32>
    %165 = vector.shape_cast %164 : vector<1x8x1xf32> to vector<8x1xf32>
    %166 = tpu.iota {dimensions = array<i32: 1>} : vector<8x16xi32>
    %c16_i32_84 = arith.constant 16 : i32
    %c0_i32_85 = arith.constant 0 : i32
    %167 = arith.cmpi eq, %c16_i32_84, %c0_i32_85 : i32
    %c1_i32_86 = arith.constant 1 : i32
    %168 = arith.select %167, %c1_i32_86, %c16_i32_84 : i32
    %169 = vector.broadcast %168 : i32 to vector<8x16xi32>
    %170 = arith.remsi %166, %169 : vector<8x16xi32>
    %c0_i32_87 = arith.constant 0 : i32
    %171 = vector.broadcast %c0_i32_87 : i32 to vector<8x16xi32>
    %172 = arith.cmpi ne, %170, %171 : vector<8x16xi32>
    %c0_i32_88 = arith.constant 0 : i32
    %173 = vector.broadcast %c0_i32_88 : i32 to vector<8x16xi32>
    %174 = arith.cmpi slt, %170, %173 : vector<8x16xi32>
    %c0_i32_89 = arith.constant 0 : i32
    %175 = arith.cmpi slt, %168, %c0_i32_89 : i32
    %176 = vector.broadcast %175 : i1 to vector<8x16xi1>
    %177 = vector.broadcast %176 : vector<8x16xi1> to vector<8x16xi1>
    %178 = arith.xori %174, %177 : vector<8x16xi1>
    %179 = arith.andi %178, %172 : vector<8x16xi1>
    %180 = vector.broadcast %168 : i32 to vector<8x16xi32>
    %181 = arith.addi %170, %180 : vector<8x16xi32>
    %182 = arith.select %179, %181, %170 : vector<8x16xi1>, vector<8x16xi32>
    %c4_i32 = arith.constant 4 : i32
    %183 = vector.broadcast %c4_i32 : i32 to vector<8x16xi32>
    %184 = arith.cmpi sge, %182, %183 : vector<8x16xi32>
    %c4_i32_90 = arith.constant 4 : i32
    %185 = tpu.dynamic_rotate %161 by %c4_i32_90 dim 1 : vector<8x16xf32>, i32 -> vector<8x16xf32>
    %cst_91 = arith.constant 0.000000e+00 : f32
    %186 = vector.broadcast %cst_91 : f32 to vector<8x16xf32>
    %187 = arith.select %184, %185, %186 : vector<8x16xi1>, vector<8x16xf32>
    %c12_i32 = arith.constant 12 : i32
    %188 = vector.broadcast %c12_i32 : i32 to vector<8x16xi32>
    %189 = arith.cmpi slt, %182, %188 : vector<8x16xi32>
    %c12_i32_92 = arith.constant 12 : i32
    %190 = tpu.dynamic_rotate %161 by %c12_i32_92 dim 1 : vector<8x16xf32>, i32 -> vector<8x16xf32>
    %cst_93 = arith.constant 0.000000e+00 : f32
    %191 = vector.broadcast %cst_93 : f32 to vector<8x16xf32>
    %192 = arith.select %189, %190, %191 : vector<8x16xi1>, vector<8x16xf32>
    %193 = tpu.concatenate %187, %161, %192 in 0 : vector<8x16xf32>, vector<8x16xf32>, vector<8x16xf32> -> vector<24x16xf32>
    %cst_94 = arith.constant dense<0.000000e+00> : vector<8x16xf32>
    %194 = tpu.matmul %163, %193, %cst_94 {dimension_numbers = #tpu.dot_dimension_numbers<[1], [0], [0], [1], [0, 0, 1, 1], [], []>} : vector<8x24xf32>, vector<24x16xf32>, vector<8x16xf32> -> vector<8x16xf32>
    %195 = vector.broadcast %165 : vector<8x1xf32> to vector<8x16xf32>
    %196 = arith.addf %194, %195 : vector<8x16xf32>
    %197 = arith.addf %196, %124 : vector<8x16xf32>
    %cst_95 = arith.constant 0.000000e+00 : f32
    %198 = vector.broadcast %cst_95 : f32 to vector<8x16xf32>
    %199 = arith.maximumf %197, %198 : vector<8x16xf32>
    %c0_96 = arith.constant 0 : index
    %c0_97 = arith.constant 0 : index
    %200 = vector.load %arg4[%c0_96, %c0_97] : memref<16x1xf32, #tpu.memory_space<vmem>>, vector<16x1xf32>
    %cst_98 = arith.constant dense<0.000000e+00> : vector<8x1xf32>
    %201 = tpu.matmul %199, %200, %cst_98 {dimension_numbers = #tpu.dot_dimension_numbers<[1], [0], [0], [1], [0, 0, 1, 1], [], []>} : vector<8x16xf32>, vector<16x1xf32>, vector<8x1xf32> -> vector<8x1xf32>
    %202 = vector.shape_cast %201 : vector<8x1xf32> to vector<1x8x1xf32>
    %c0_99 = arith.constant 0 : index
    %c0_100 = arith.constant 0 : index
    %c0_101 = arith.constant 0 : index
    %203 = vector.load %arg5[%c0_99, %c0_100, %c0_101] : memref<1x8x1xf32, #tpu.memory_space<vmem>>, vector<1x8x1xf32>
    tpu.vector_store %arg5[%c0_99, %c0_100, %c0_101], %202 {strides = array<i32>} : memref<1x8x1xf32, #tpu.memory_space<vmem>>, vector<1x8x1xf32>,
    return
  }
  func.func @transform_0(%arg0: i32) -> (i32, i32, i32) {
    %c0_i32 = arith.constant 0 : i32
    %c0_i32_0 = arith.constant 0 : i32
    %c0_i32_1 = arith.constant 0 : i32
    return %arg0, %c0_i32, %c0_i32_0 : i32, i32, i32
  }
  func.func @transform_1(%arg0: i32) -> (i32, i32, i32) {
    %c0_i32 = arith.constant 0 : i32
    %c0_i32_0 = arith.constant 0 : i32
    %c0_i32_1 = arith.constant 0 : i32
    %c0_i32_2 = arith.constant 0 : i32
    return %c0_i32, %c0_i32_0, %c0_i32_1 : i32, i32, i32
  }
  func.func @transform_2(%arg0: i32) -> (i32, i32, i32) {
    %c0_i32 = arith.constant 0 : i32
    %c0_i32_0 = arith.constant 0 : i32
    %c0_i32_1 = arith.constant 0 : i32
    %c0_i32_2 = arith.constant 0 : i32
    return %c0_i32, %c0_i32_0, %c0_i32_1 : i32, i32, i32
  }
  func.func @transform_3(%arg0: i32) -> (i32, i32) {
    %c0_i32 = arith.constant 0 : i32
    %c0_i32_0 = arith.constant 0 : i32
    %c0_i32_1 = arith.constant 0 : i32
    return %c0_i32, %c0_i32_0 : i32, i32
  }
  func.func @transform_4(%arg0: i32) -> (i32, i32, i32) {
    %c0_i32 = arith.constant 0 : i32
    %c0_i32_0 = arith.constant 0 : i32
    %c0_i32_1 = arith.constant 0 : i32
    return %arg0, %c0_i32, %c0_i32_0 : i32, i32, i32
  }
}

</mosaic_0001>

<llo_original>
// kernel: forward.1
$region0: #{forward.1}
  #allocation0 [shape = 'u32[]', space=smem, size = 0x4, offset = 0x4, fixed_abs, tag = 'smem constant byte address 0x4 - core index']
  #allocation1 [shape = 'u32[144,128]{1,0:T(1,128)}', space=vmem, size = 0x12000, scoped, tag = 'internal scratch']
  %s0 = inlined_call_operand.hbm [shape: f32[2,4,16], index: 0, kind: input, shape index: {}]
  %s1 = inlined_call_operand.vmem [shape: f32[6,8,24], index: 1, kind: input, shape index: {}]
  %s2 = inlined_call_operand.vmem [shape: f32[6,8,1], index: 2, kind: input, shape index: {}]
  %s3 = inlined_call_operand.vmem [shape: f32[16,1], index: 3, kind: input, shape index: {}]
  %s4 = inlined_call_operand.vmem [shape: f32[2,8,1], index: 4, kind: output, shape index: {}]
  %s5 = sld [smem:[#allocation0]]
  $region53: #{forward.1} parent=0
    _
  %s7 = ssub.s32 1, %s5
  %s8 = scalar_select 0, %s7, %s5
  $region1: #{forward.1} parent=0
    #allocation2 [shape = 'u8[4096]{0}', space=vmem, size = 0x1000, scoped, tag = 'input window, operand 0']
    #allocation3 [shape = 's32[2]{0}', space=sflag, size = 0x8, scoped, tag = 'scoped memory for forward.1']
    %9 = vsyncpa [#allocation3], 0
    %s10 = scalar_lea.sflag [#allocation3], 1
    %11 = vsyncpa %s10, 0
    loop: start=0, step=1, limit=4
    $region2: #{forward.1} parent=1 // loop_pre_header
      _
    $region3: #{forward.1} parent=1 // loop_header
      %s13 = sphi 0, %s17
      %p14 = scmp.ge.s32.totalorder %s13, 4
      %s23 = sphi 0, %s25
      %s26 = sphi 0, %s23
      %s27 = sphi 0, %s26
      %s43 = sphi 0, %s27
      %s47 = sphi 0, %s47
      %s49 = sphi 0, %s47
      %s50 = sphi 0, %s49
      %s64 = sphi 0, %s50
      %s68 = sphi 0, %s68
      %s70 = sphi 0, %s68
      %s71 = sphi 0, %s70
      %s85 = sphi 0, %s71
      %s89 = sphi 0, %s89
      %s91 = sphi 0, %s89
      %s92 = sphi 0, %s91
      %s106 = sphi 0, %s92
      %s112 = sphi 0, %s114
      %s115 = sphi 0, %s112
      %s116 = sphi 0, %s115
      %s132 = sphi 0, %s116
    $region4: #{forward.1} parent=1 // loop_header_branch
      %16 = sbr.rel (%p14) target = $region8
    $region5: #{forward.1} parent=1 // loop_body
      %s18 = ssub.s32 %s13, 1
      %s19 = ssub.s32 %s13, 2
      %s20 = sadd.s32 %s13, 1
      %s21 = ssub.s32 %s13, %s20
      %p22 = scmp.eq.s32.totalorder %s21, 0
      %s24 = sadd.s32 %s23, 1
      %s25 = scalar_select %p22, %s23, %s24
      %p28 = pneg %p22
      %p29 = scmp.eq.s32.totalorder %s13, 1
      %p30 = por %p28, %p29
      %p31 = scmp.ne.s32.totalorder %s23, %s26
      %p32 = scmp.eq.s32.totalorder %s13, 0
      %p33 = por %p31, %p32
      %p34 = scmp.ne.s32.totalorder %s23, %s26
      %p35 = scmp.eq.s32.totalorder %s18, 1
      %p36 = por %p34, %p35
      %p37 = scmp.ne.s32.totalorder %s26, %s27
      %p38 = scmp.eq.s32.totalorder %s18, 0
      %p39 = por %p37, %p38
      %p40 = scmp.ne.s32.totalorder %s26, %s27
      %p41 = scmp.eq.s32.totalorder %s19, 1
      %p42 = por %p40, %p41
      %p44 = scmp.ne.s32.totalorder %s27, %s43
      %p45 = scmp.eq.s32.totalorder %s19, 0
      %p46 = por %p44, %p45
      %s48 = sadd.s32 %s47, 1
      %p51 = scmp.eq.s32.totalorder %s13, 1
      %p52 = scmp.ne.s32.totalorder %s47, %s49
      %p53 = scmp.eq.s32.totalorder %s13, 0
      %p54 = por %p52, %p53
      %p55 = scmp.ne.s32.totalorder %s47, %s49
      %p56 = scmp.eq.s32.totalorder %s18, 1
      %p57 = por %p55, %p56
      %p58 = scmp.ne.s32.totalorder %s49, %s50
      %p59 = scmp.eq.s32.totalorder %s18, 0
      %p60 = por %p58, %p59
      %p61 = scmp.ne.s32.totalorder %s49, %s50
      %p62 = scmp.eq.s32.totalorder %s19, 1
      %p63 = por %p61, %p62
      %p65 = scmp.ne.s32.totalorder %s50, %s64
      %p66 = scmp.eq.s32.totalorder %s19, 0
      %p67 = por %p65, %p66
      %s69 = sadd.s32 %s68, 1
      %p72 = scmp.eq.s32.totalorder %s13, 1
      %p73 = scmp.ne.s32.totalorder %s68, %s70
      %p74 = scmp.eq.s32.totalorder %s13, 0
      %p75 = por %p73, %p74
      %p76 = scmp.ne.s32.totalorder %s68, %s70
      %p77 = scmp.eq.s32.totalorder %s18, 1
      %p78 = por %p76, %p77
      %p79 = scmp.ne.s32.totalorder %s70, %s71
      %p80 = scmp.eq.s32.totalorder %s18, 0
      %p81 = por %p79, %p80
      %p82 = scmp.ne.s32.totalorder %s70, %s71
      %p83 = scmp.eq.s32.totalorder %s19, 1
      %p84 = por %p82, %p83
      %p86 = scmp.ne.s32.totalorder %s71, %s85
      %p87 = scmp.eq.s32.totalorder %s19, 0
      %p88 = por %p86, %p87
      %s90 = sadd.s32 %s89, 1
      %p93 = scmp.eq.s32.totalorder %s13, 1
      %p94 = scmp.ne.s32.totalorder %s89, %s91
      %p95 = scmp.eq.s32.totalorder %s13, 0
      %p96 = por %p94, %p95
      %p97 = scmp.ne.s32.totalorder %s89, %s91
      %p98 = scmp.eq.s32.totalorder %s18, 1
      %p99 = por %p97, %p98
      %p100 = scmp.ne.s32.totalorder %s91, %s92
      %p101 = scmp.eq.s32.totalorder %s18, 0
      %p102 = por %p100, %p101
      %p103 = scmp.ne.s32.totalorder %s91, %s92
      %p104 = scmp.eq.s32.totalorder %s19, 1
      %p105 = por %p103, %p104
      %p107 = scmp.ne.s32.totalorder %s92, %s106
      %p108 = scmp.eq.s32.totalorder %s19, 0
      %p109 = por %p107, %p108
      %s110 = ssub.s32 %s13, %s20
      %p111 = scmp.eq.s32.totalorder %s110, 0
      %s113 = sadd.s32 %s112, 1
      %s114 = scalar_select %p111, %s112, %s113
      %p117 = pneg %p111
      %p118 = scmp.eq.s32.totalorder %s13, 1
      %p119 = por %p117, %p118
      %p120 = scmp.ne.s32.totalorder %s112, %s115
      %p121 = scmp.eq.s32.totalorder %s13, 0
      %p122 = por %p120, %p121
      %p123 = scmp.ne.s32.totalorder %s112, %s115
      %p124 = scmp.eq.s32.totalorder %s18, 1
      %p125 = por %p123, %p124
      %p126 = scmp.ne.s32.totalorder %s115, %s116
      %p127 = scmp.eq.s32.totalorder %s18, 0
      %p128 = por %p126, %p127
      %p129 = scmp.ne.s32.totalorder %s115, %s116
      %p130 = scmp.eq.s32.totalorder %s19, 1
      %p131 = por %p129, %p130
      %p133 = scmp.ne.s32.totalorder %s116, %s132
      %p134 = scmp.eq.s32.totalorder %s19, 0
      %p135 = por %p133, %p134
      %p136 = scmp.le.s32.totalorder 1, %s13
      %p137 = scmp.lt.s32.totalorder %s13, 3
      %p138 = pnand %p136, %p137
      %p139 = pneg %p138
      // Predicated region
      $region9: #{forward.1} parent=5 // pred_check
        _
      $region10: #{forward.1} parent=5 // pred_check_branch
        %141 = sbr.rel (%p138) target = $region12
      $region11: #{forward.1} parent=5 // pred_region
        %s142 = ssub.s32 %s13, 1
        // Predicated region
        $region13: #{forward.1} parent=11 // pred_check
          %p143 = pneg %p60
        $region14: #{forward.1} parent=11 // pred_check_branch
          %145 = sbr.rel (%p143) target = $region16
        $region15: #{forward.1} parent=11 // pred_region
          _
        $region16: #{forward.1} parent=11 // pred_fallthru
          _
        // Predicated region
        $region17: #{forward.1} parent=11 // pred_check
          %p146 = pneg %p81
        $region18: #{forward.1} parent=11 // pred_check_branch
          %148 = sbr.rel (%p146) target = $region20
        $region19: #{forward.1} parent=11 // pred_region
          _
        $region20: #{forward.1} parent=11 // pred_fallthru
          _
        // Predicated region
        $region21: #{forward.1} parent=11 // pred_check
          %p149 = pneg %p102
        $region22: #{forward.1} parent=11 // pred_check_branch
          %151 = sbr.rel (%p149) target = $region24
        $region23: #{forward.1} parent=11 // pred_region
          _
        $region24: #{forward.1} parent=11 // pred_fallthru
          _
      $region12: #{forward.1} parent=5 // pred_fallthru
        _
      %p152 = scmp.lt.s32.totalorder %s13, 2
      // Predicated region
      $region25: #{forward.1} parent=5 // pred_check
        %p153 = pneg %p152
      $region26: #{forward.1} parent=5 // pred_check_branch
        %155 = sbr.rel (%p153) target = $region28
      $region27: #{forward.1} parent=5 // pred_region
        // Predicated region
        $region29: #{forward.1} parent=27 // pred_check
          %p156 = pneg %p33
        $region30: #{forward.1} parent=27 // pred_check_branch
          %158 = sbr.rel (%p156) target = $region32
        $region31: #{forward.1} parent=27 // pred_region
          %s159 = sand.u32 %s23, 1
          %s160 = scalar_lea.sflag [#allocation3], %s159
          %s161 = sand.u32 %s23, 1
          %s162 = smul.addr %s161, 4
          %s163 = scalar_lea.vmem [#allocation2], %s162
          %s165 = ssub.s32 64, 64
          %166 = vsyncadd %s160, %s165
          %s167 = smul.addr %s13, 64
          %s168 = scalar_lea.hbm %s0, %s167
          %s170 = sshll.u32 %s163, 4
          %s171 = int_to_ptr.vmem [resolvable:$true] %s170
          %173 = dma.hbm_to_vmem [thread:$0]  %s168, 64, %s171, %s160
        $region32: #{forward.1} parent=27 // pred_fallthru
          _
      $region28: #{forward.1} parent=5 // pred_fallthru
        _
      %p174 = scmp.le.s32.totalorder 1, %s13
      %p175 = scmp.lt.s32.totalorder %s13, 3
      %p176 = pnand %p174, %p175
      %p177 = pneg %p176
      // Predicated region
      $region33: #{forward.1} parent=5 // pred_check
        _
      $region34: #{forward.1} parent=5 // pred_check_branch
        %179 = sbr.rel (%p176) target = $region36
      $region35: #{forward.1} parent=5 // pred_region
        %s180 = ssub.s32 %s13, 1
        %s181 = sand.u32 %s26, 1
        %s182 = scalar_lea.sflag [#allocation3], %s181
        %s183 = sand.u32 %s26, 1
        %s184 = smul.addr %s183, 4
        %s185 = scalar_lea.vmem [#allocation2], %s184
        // Predicated region
        $region37: #{forward.1} parent=35 // pred_check
          %p186 = pneg %p39
        $region38: #{forward.1} parent=35 // pred_check_branch
          %188 = sbr.rel (%p186) target = $region40
        $region39: #{forward.1} parent=35 // pred_region
          %189 = dma.done %s182, 64
        $region40: #{forward.1} parent=35 // pred_fallthru
          _
        %s190 = sand.u32 %s26, 1
        %s191 = scalar_lea.sflag [#allocation3], %s190
        %s192 = sand.u32 %s26, 1
        %s193 = smul.addr %s192, 4
        %s194 = scalar_lea.vmem [#allocation2], %s193
        %p195 = pneg %p39
        %p196 = pneg %p36
        %p197 = pneg %p60
        %p198 = pneg %p57
        %p199 = pneg %p81
        %p200 = pneg %p78
        %p201 = pneg %p102
        %p202 = pneg %p99
        %p203 = pneg %p128
        %p204 = pneg %p125
        %p205 = scmp.lt.s32.totalorder %s18, 1
        %s206 = scalar_select %p205, %s18, 1
        %s207 = smul.addr %s206, 8
        %s208 = scalar_lea.vmem %s4, %s207
        %p209 = scmp.lt.s32.totalorder %s18, 1
        %s210 = scalar_select %p209, %s18, 1
        %s211 = smul.addr %s210, 8
        %s212 = scalar_lea.vmem %s4, %s211
        %v213 = vld [vmem:[%s185] sm:$0xf]
        %v214 = vld [vmem:[%s1] sm:$0xff]
        %v215 = vld [vmem:[%s2] sm:$0xff]
        %v216 = vlaneseq
        %v217 = vand.u32 %v216, 127
        %vm218 = vcmp.lt.s32.totalorder %v217, 0
        %v219 = vsub.s32 0, %v217
        %v220 = vsel %vm218, %v219, %v217
        %v221 = vshrl.u32 %v220, 4
        %v222 = vand.u32 %v220, 15
        %v223 = vsub.s32 0, %v222
        %v224 = vsel %vm218, %v223, %v222
        %vm225 = vcmp.ne.s32.totalorder %v224, 0
        %vm226 = vcmp.lt.s32.totalorder %v224, 0
        %vm227 = vmand %vm226, %vm225
        %v228 = vadd.s32 %v224, 16
        %v229 = vsel %vm227, %v228, %v224
        %vm230 = vcmp.ge.s32.totalorder %v229, 1
        %vm231 = vcmask 1047680
        %232 = vrot.lane.b32.xlu0 %v213, 16
        %v233 = vpop.permute.xlu0 %232
        %v234 = vsel %vm231, %v233, %v213
        %235 = vrot.lane.b32.xlu0 %v234, 16
        %v236 = vpop.permute.xlu0 %235
        %v237 = vsel %vm231, %v236, %v213
        %239 = vrot.lane.b32.xlu0 %v237, 113
        %v240 = vpop.permute.xlu0 %239
        %v242 = vsel %vm230, %v240, 0.0
        %vm243 = vcmp.lt.s32.totalorder %v229, 15
        %244 = vrot.lane.b32.xlu0 %v237, 127
        %v245 = vpop.permute.xlu0 %244
        %v247 = vsel %vm243, %v245, 0.0
        %v249 = vrot.slane %v213, 4
        %vm251 = vcmask 1043456
        %v252 = vsel %vm251, %v242, %v249
        %254 = vset.pattern.permute.xlu0 0
        %255 = vperm.xlu0 %254, %v215
        %v256 = vpop.permute.xlu0 %255
        %vm258 = vcmask 97280
        %v260 = vsel %vm258, %v214, 0
        %v263 = vsel %vm251, %v247, 0
        %265 = vmatprep.subr.mxu0 0.0
        %266 = vmatpush1.msra.mxu0 %v252
        %267 = vmatprep.subr.mxu0 0.0
        %268 = vmatpush1.msra.mxu0 %v263
        %269 = vmatprep.subr.mxu0 0.0
        %270 = vmatpush1.msra.mxu0 0.0
        %271 = vmatprep.subr.mxu0 0.0
        %272 = vmatpush1.msra.mxu0 0.0
        %273 = vmatprep.subr.mxu0 0.0
        %274 = vmatpush1.msra.mxu0 0.0
        %275 = vmatprep.subr.mxu0 0.0
        %276 = vmatpush1.msra.mxu0 0.0
        %277 = vmatprep.subr.mxu0 0.0
        %278 = vmatpush1.msra.mxu0 0.0
        %279 = vmatprep.subr.mxu0 0.0
        %280 = vmatpush1.msra.mxu0 0.0
        %281 = vmatprep.subr.mxu0 0.0
        %282 = vmatpush1.msra.mxu0 0.0
        %283 = vmatprep.subr.mxu0 0.0
        %284 = vmatpush1.msra.mxu0 0.0
        %285 = vmatprep.subr.mxu0 0.0
        %286 = vmatpush1.msra.mxu0 0.0
        %287 = vmatprep.subr.mxu0 0.0
        %288 = vmatpush1.msra.mxu0 0.0
        %289 = vmatprep.subr.mxu0 0.0
        %290 = vmatpush1.msra.mxu0 0.0
        %291 = vmatprep.subr.mxu0 0.0
        %292 = vmatpush1.msra.mxu0 0.0
        %293 = vmatprep.subr.mxu0 0.0
        %294 = vmatpush1.msra.mxu0 0.0
        %295 = vmatprep.subr.mxu0 0.0
        %296 = vmatpush1.msra.mxu0 0.0
        %297 = vmatprep.subr.mxu0 0.0
        %298 = vmatpush1.msra.mxu0 0.0
        %299 = vmatprep.subr.mxu0 0.0
        %300 = vmatpush1.msra.mxu0 0.0
        %301 = vmatprep.subr.mxu0 0.0
        %302 = vmatpush1.msra.mxu0 0.0
        %303 = vmatprep.subr.mxu0 0.0
        %304 = vmatpush1.msra.mxu0 0.0
        %305 = vmatprep.subr.mxu0 0.0
        %306 = vmatpush1.msra.mxu0 0.0
        %307 = vmatprep.subr.mxu0 0.0
        %308 = vmatpush1.msra.mxu0 0.0
        %309 = vmatprep.subr.mxu0 0.0
        %310 = vmatpush1.msra.mxu0 0.0
        %311 = vmatprep.subr.mxu0 0.0
        %312 = vmatpush1.msra.mxu0 0.0
        %313 = vmatprep.subr.mxu0 0.0
        %314 = vmatpush1.msra.mxu0 0.0
        %315 = vmatprep.subr.mxu0 0.0
        %316 = vmatpush1.msra.mxu0 0.0
        %317 = vmatprep.subr.mxu0 0.0
        %318 = vmatpush1.msra.mxu0 0.0
        %319 = vmatprep.subr.mxu0 0.0
        %320 = vmatpush1.msra.mxu0 0.0
        %321 = vmatprep.subr.mxu0 0.0
        %322 = vmatpush1.msra.mxu0 0.0
        %323 = vmatprep.subr.mxu0 0.0
        %324 = vmatpush1.msra.mxu0 0.0
        %325 = vmatprep.subr.mxu0 0.0
        %326 = vmatpush1.msra.mxu0 0.0
        %327 = vmatprep.subr.mxu0 0.0
        %328 = vmatpush1.msra.mxu0 0.0
        %329 = vmatprep.mubr.f32.mxu0 0.0
        %330 = vmatmul.mubr.f32.gmra.mrb[0].mxu0 %v260
        %v331 = vpop.f32.mrb[0].mxu0
        %v332 = vadd.f32 %v256, %v331
        %v333 = vpop.f32.mrb[0].mxu0
        %334 = vdwg.mxu0
        %v335 = vmax.f32 %v332, 0.0
        %336 = vrot.lane.b32.xlu0 %v335, 16
        %v337 = vpop.permute.xlu0 %336
        %v338 = vsel %vm231, %v337, %v335
        %339 = vrot.lane.b32.xlu0 %v338, 16
        %v340 = vpop.permute.xlu0 %339
        %v341 = vsel %vm231, %v340, %v335
        %343 = vrot.lane.b32.xlu0 %v341, 127
        %v344 = vpop.permute.xlu0 %343
        %v346 = vmax.f32 %v335, %v344
        %s347 = scalar_lea.vmem %s1, 8
        %v348 = vld [vmem:[%s347] sm:$0xff]
        %s349 = scalar_lea.vmem %s2, 8
        %v350 = vld [vmem:[%s349] sm:$0xff]
        %vm351 = vcmp.ge.s32.totalorder %v229, 2
        %352 = vrot.lane.b32.xlu0 %v346, 16
        %v353 = vpop.permute.xlu0 %352
        %v354 = vsel %vm231, %v353, %v346
        %355 = vrot.lane.b32.xlu0 %v354, 16
        %v356 = vpop.permute.xlu0 %355
        %v357 = vsel %vm231, %v356, %v346
        %359 = vrot.lane.b32.xlu0 %v357, 114
        %v360 = vpop.permute.xlu0 %359
        %v362 = vsel %vm351, %v360, 0.0
        %vm363 = vcmp.lt.s32.totalorder %v229, 14
        %364 = vrot.lane.b32.xlu0 %v357, 126
        %v365 = vpop.permute.xlu0 %364
        %v367 = vsel %vm363, %v365, 0.0
        %369 = vset.pattern.permute.xlu0 0
        %370 = vperm.xlu0 %369, %v350
        %v371 = vpop.permute.xlu0 %370
        %vm373 = vcmask 195584
        %v375 = vsel %vm373, %v348, 0
        %377 = vmatprep.subr.mxu0 0.0
        %378 = vmatpush1.msra.mxu0 %v362
        %379 = vmatprep.subr.mxu0 0.0
        %380 = vmatpush1.msra.mxu0 %v346
        %381 = vmatprep.subr.mxu0 0.0
        %382 = vmatpush1.msra.mxu0 %v367
        %383 = vmatprep.subr.mxu0 0.0
        %384 = vmatpush1.msra.mxu0 0.0
        %385 = vmatprep.subr.mxu0 0.0
        %386 = vmatpush1.msra.mxu0 0.0
        %387 = vmatprep.subr.mxu0 0.0
        %388 = vmatpush1.msra.mxu0 0.0
        %389 = vmatprep.subr.mxu0 0.0
        %390 = vmatpush1.msra.mxu0 0.0
        %391 = vmatprep.subr.mxu0 0.0
        %392 = vmatpush1.msra.mxu0 0.0
        %393 = vmatprep.subr.mxu0 0.0
        %394 = vmatpush1.msra.mxu0 0.0
        %395 = vmatprep.subr.mxu0 0.0
        %396 = vmatpush1.msra.mxu0 0.0
        %397 = vmatprep.subr.mxu0 0.0
        %398 = vmatpush1.msra.mxu0 0.0
        %399 = vmatprep.subr.mxu0 0.0
        %400 = vmatpush1.msra.mxu0 0.0
        %401 = vmatprep.subr.mxu0 0.0
        %402 = vmatpush1.msra.mxu0 0.0
        %403 = vmatprep.subr.mxu0 0.0
        %404 = vmatpush1.msra.mxu0 0.0
        %405 = vmatprep.subr.mxu0 0.0
        %406 = vmatpush1.msra.mxu0 0.0
        %407 = vmatprep.subr.mxu0 0.0
        %408 = vmatpush1.msra.mxu0 0.0
        %409 = vmatprep.subr.mxu0 0.0
        %410 = vmatpush1.msra.mxu0 0.0
        %411 = vmatprep.subr.mxu0 0.0
        %412 = vmatpush1.msra.mxu0 0.0
        %413 = vmatprep.subr.mxu0 0.0
        %414 = vmatpush1.msra.mxu0 0.0
        %415 = vmatprep.subr.mxu0 0.0
        %416 = vmatpush1.msra.mxu0 0.0
        %417 = vmatprep.subr.mxu0 0.0
        %418 = vmatpush1.msra.mxu0 0.0
        %419 = vmatprep.subr.mxu0 0.0
        %420 = vmatpush1.msra.mxu0 0.0
        %421 = vmatprep.subr.mxu0 0.0
        %422 = vmatpush1.msra.mxu0 0.0
        %423 = vmatprep.subr.mxu0 0.0
        %424 = vmatpush1.msra.mxu0 0.0
        %425 = vmatprep.subr.mxu0 0.0
        %426 = vmatpush1.msra.mxu0 0.0
        %427 = vmatprep.subr.mxu0 0.0
        %428 = vmatpush1.msra.mxu0 0.0
        %429 = vmatprep.subr.mxu0 0.0
        %430 = vmatpush1.msra.mxu0 0.0
        %431 = vmatprep.subr.mxu0 0.0
        %432 = vmatpush1.msra.mxu0 0.0
        %433 = vmatprep.subr.mxu0 0.0
        %434 = vmatpush1.msra.mxu0 0.0
        %435 = vmatprep.subr.mxu0 0.0
        %436 = vmatpush1.msra.mxu0 0.0
        %437 = vmatprep.subr.mxu0 0.0
        %438 = vmatpush1.msra.mxu0 0.0
        %439 = vmatprep.subr.mxu0 0.0
        %440 = vmatpush1.msra.mxu0 0.0
        %441 = vmatprep.mubr.f32.mxu0 0.0
        %442 = vmatmul.mubr.f32.gmra.mrb[0].mxu0 %v375
        %v443 = vpop.f32.mrb[0].mxu0
        %v444 = vadd.f32 %v371, %v443
        %v445 = vpop.f32.mrb[0].mxu0
        %446 = vdwg.mxu0
        %v447 = vmax.f32 %v444, 0.0
        %s448 = scalar_lea.vmem %s1, 16
        %v449 = vld [vmem:[%s448] sm:$0xff]
        %s450 = scalar_lea.vmem %s2, 16
        %v451 = vld [vmem:[%s450] sm:$0xff]
        %452 = vrot.lane.b32.xlu0 %v447, 16
        %v453 = vpop.permute.xlu0 %452
        %v454 = vsel %vm231, %v453, %v447
        %455 = vrot.lane.b32.xlu0 %v454, 16
        %v456 = vpop.permute.xlu0 %455
        %v457 = vsel %vm231, %v456, %v447
        %459 = vrot.lane.b32.xlu0 %v457, 114
        %v460 = vpop.permute.xlu0 %459
        %v462 = vsel %vm351, %v460, 0.0
        %463 = vrot.lane.b32.xlu0 %v457, 126
        %v464 = vpop.permute.xlu0 %463
        %v466 = vsel %vm363, %v464, 0.0
        %468 = vset.pattern.permute.xlu0 0
        %469 = vperm.xlu0 %468, %v451
        %v470 = vpop.permute.xlu0 %469
        %v473 = vsel %vm373, %v449, 0
        %475 = vmatprep.subr.mxu0 0.0
        %476 = vmatpush1.msra.mxu0 %v462
        %477 = vmatprep.subr.mxu0 0.0
        %478 = vmatpush1.msra.mxu0 %v447
        %479 = vmatprep.subr.mxu0 0.0
        %480 = vmatpush1.msra.mxu0 %v466
        %481 = vmatprep.subr.mxu0 0.0
        %482 = vmatpush1.msra.mxu0 0.0
        %483 = vmatprep.subr.mxu0 0.0
        %484 = vmatpush1.msra.mxu0 0.0
        %485 = vmatprep.subr.mxu0 0.0
        %486 = vmatpush1.msra.mxu0 0.0
        %487 = vmatprep.subr.mxu0 0.0
        %488 = vmatpush1.msra.mxu0 0.0
        %489 = vmatprep.subr.mxu0 0.0
        %490 = vmatpush1.msra.mxu0 0.0
        %491 = vmatprep.subr.mxu0 0.0
        %492 = vmatpush1.msra.mxu0 0.0
        %493 = vmatprep.subr.mxu0 0.0
        %494 = vmatpush1.msra.mxu0 0.0
        %495 = vmatprep.subr.mxu0 0.0
        %496 = vmatpush1.msra.mxu0 0.0
        %497 = vmatprep.subr.mxu0 0.0
        %498 = vmatpush1.msra.mxu0 0.0
        %499 = vmatprep.subr.mxu0 0.0
        %500 = vmatpush1.msra.mxu0 0.0
        %501 = vmatprep.subr.mxu0 0.0
        %502 = vmatpush1.msra.mxu0 0.0
        %503 = vmatprep.subr.mxu0 0.0
        %504 = vmatpush1.msra.mxu0 0.0
        %505 = vmatprep.subr.mxu0 0.0
        %506 = vmatpush1.msra.mxu0 0.0
        %507 = vmatprep.subr.mxu0 0.0
        %508 = vmatpush1.msra.mxu0 0.0
        %509 = vmatprep.subr.mxu0 0.0
        %510 = vmatpush1.msra.mxu0 0.0
        %511 = vmatprep.subr.mxu0 0.0
        %512 = vmatpush1.msra.mxu0 0.0
        %513 = vmatprep.subr.mxu0 0.0
        %514 = vmatpush1.msra.mxu0 0.0
        %515 = vmatprep.subr.mxu0 0.0
        %516 = vmatpush1.msra.mxu0 0.0
        %517 = vmatprep.subr.mxu0 0.0
        %518 = vmatpush1.msra.mxu0 0.0
        %519 = vmatprep.subr.mxu0 0.0
        %520 = vmatpush1.msra.mxu0 0.0
        %521 = vmatprep.subr.mxu0 0.0
        %522 = vmatpush1.msra.mxu0 0.0
        %523 = vmatprep.subr.mxu0 0.0
        %524 = vmatpush1.msra.mxu0 0.0
        %525 = vmatprep.subr.mxu0 0.0
        %526 = vmatpush1.msra.mxu0 0.0
        %527 = vmatprep.subr.mxu0 0.0
        %528 = vmatpush1.msra.mxu0 0.0
        %529 = vmatprep.subr.mxu0 0.0
        %530 = vmatpush1.msra.mxu0 0.0
        %531 = vmatprep.subr.mxu0 0.0
        %532 = vmatpush1.msra.mxu0 0.0
        %533 = vmatprep.subr.mxu0 0.0
        %534 = vmatpush1.msra.mxu0 0.0
        %535 = vmatprep.subr.mxu0 0.0
        %536 = vmatpush1.msra.mxu0 0.0
        %537 = vmatprep.subr.mxu0 0.0
        %538 = vmatpush1.msra.mxu0 0.0
        %539 = vmatprep.mubr.f32.mxu0 0.0
        %540 = vmatmul.mubr.f32.gmra.mrb[0].mxu0 %v473
        %v541 = vpop.f32.mrb[0].mxu0
        %v542 = vadd.f32 %v470, %v541
        %v543 = vpop.f32.mrb[0].mxu0
        %544 = vdwg.mxu0
        %v545 = vadd.f32 %v542, %v346
        %v546 = vmax.f32 %v545, 0.0
        %s547 = scalar_lea.vmem %s1, 40
        %v548 = vld [vmem:[%s547] sm:$0xff]
        %s549 = scalar_lea.vmem %s2, 40
        %v550 = vld [vmem:[%s549] sm:$0xff]
        %552 = vset.pattern.permute.xlu0 0
        %553 = vperm.xlu0 %552, %v550
        %v554 = vpop.permute.xlu0 %553
        %vm556 = vcmask 64512
        %v558 = vsel %vm556, %v548, 0
        %560 = vmatprep.subr.mxu0 0.0
        %561 = vmatpush1.msra.mxu0 %v546
        %562 = vmatprep.subr.mxu0 0.0
        %563 = vmatpush1.msra.mxu0 0.0
        %564 = vmatprep.subr.mxu0 0.0
        %565 = vmatpush1.msra.mxu0 0.0
        %566 = vmatprep.subr.mxu0 0.0
        %567 = vmatpush1.msra.mxu0 0.0
        %568 = vmatprep.subr.mxu0 0.0
        %569 = vmatpush1.msra.mxu0 0.0
        %570 = vmatprep.subr.mxu0 0.0
        %571 = vmatpush1.msra.mxu0 0.0
        %572 = vmatprep.subr.mxu0 0.0
        %573 = vmatpush1.msra.mxu0 0.0
        %574 = vmatprep.subr.mxu0 0.0
        %575 = vmatpush1.msra.mxu0 0.0
        %576 = vmatprep.subr.mxu0 0.0
        %577 = vmatpush1.msra.mxu0 0.0
        %578 = vmatprep.subr.mxu0 0.0
        %579 = vmatpush1.msra.mxu0 0.0
        %580 = vmatprep.subr.mxu0 0.0
        %581 = vmatpush1.msra.mxu0 0.0
        %582 = vmatprep.subr.mxu0 0.0
        %583 = vmatpush1.msra.mxu0 0.0
        %584 = vmatprep.subr.mxu0 0.0
        %585 = vmatpush1.msra.mxu0 0.0
        %586 = vmatprep.subr.mxu0 0.0
        %587 = vmatpush1.msra.mxu0 0.0
        %588 = vmatprep.subr.mxu0 0.0
        %589 = vmatpush1.msra.mxu0 0.0
        %590 = vmatprep.subr.mxu0 0.0
        %591 = vmatpush1.msra.mxu0 0.0
        %592 = vmatprep.subr.mxu0 0.0
        %593 = vmatpush1.msra.mxu0 0.0
        %594 = vmatprep.subr.mxu0 0.0
        %595 = vmatpush1.msra.mxu0 0.0
        %596 = vmatprep.subr.mxu0 0.0
        %597 = vmatpush1.msra.mxu0 0.0
        %598 = vmatprep.subr.mxu0 0.0
        %599 = vmatpush1.msra.mxu0 0.0
        %600 = vmatprep.subr.mxu0 0.0
        %601 = vmatpush1.msra.mxu0 0.0
        %602 = vmatprep.subr.mxu0 0.0
        %603 = vmatpush1.msra.mxu0 0.0
        %604 = vmatprep.subr.mxu0 0.0
        %605 = vmatpush1.msra.mxu0 0.0
        %606 = vmatprep.subr.mxu0 0.0
        %607 = vmatpush1.msra.mxu0 0.0
        %608 = vmatprep.subr.mxu0 0.0
        %609 = vmatpush1.msra.mxu0 0.0
        %610 = vmatprep.subr.mxu0 0.0
        %611 = vmatpush1.msra.mxu0 0.0
        %612 = vmatprep.subr.mxu0 0.0
        %613 = vmatpush1.msra.mxu0 0.0
        %614 = vmatprep.subr.mxu0 0.0
        %615 = vmatpush1.msra.mxu0 0.0
        %616 = vmatprep.subr.mxu0 0.0
        %617 = vmatpush1.msra.mxu0 0.0
        %618 = vmatprep.subr.mxu0 0.0
        %619 = vmatpush1.msra.mxu0 0.0
        %620 = vmatprep.subr.mxu0 0.0
        %621 = vmatpush1.msra.mxu0 0.0
        %622 = vmatprep.subr.mxu0 0.0
        %623 = vmatpush1.msra.mxu0 0.0
        %624 = vmatprep.mubr.f32.mxu0 0.0
        %625 = vmatmul.mubr.f32.gmra.mrb[0].mxu0 %v558
        %v626 = vpop.f32.mrb[0].mxu0
        %v627 = vadd.f32 %v554, %v626
        %v628 = vpop.f32.mrb[0].mxu0
        %629 = vdwg.mxu0
        %s630 = scalar_lea.vmem %s1, 24
        %v631 = vld [vmem:[%s630] sm:$0xff]
        %s632 = scalar_lea.vmem %s2, 24
        %v633 = vld [vmem:[%s632] sm:$0xff]
        %634 = vrot.lane.b32.xlu0 %v546, 16
        %v635 = vpop.permute.xlu0 %634
        %v636 = vsel %vm231, %v635, %v546
        %637 = vrot.lane.b32.xlu0 %v636, 16
        %v638 = vpop.permute.xlu0 %637
        %v639 = vsel %vm231, %v638, %v546
        %641 = vrot.lane.b32.xlu0 %v639, 114
        %v642 = vpop.permute.xlu0 %641
        %v644 = vsel %vm351, %v642, 0.0
        %645 = vrot.lane.b32.xlu0 %v639, 126
        %v646 = vpop.permute.xlu0 %645
        %v648 = vsel %vm363, %v646, 0.0
        %650 = vset.pattern.permute.xlu0 0
        %651 = vperm.xlu0 %650, %v633
        %v652 = vpop.permute.xlu0 %651
        %v655 = vsel %vm373, %v631, 0
        %657 = vmatprep.subr.mxu0 0.0
        %658 = vmatpush1.msra.mxu0 %v644
        %659 = vmatprep.subr.mxu0 0.0
        %660 = vmatpush1.msra.mxu0 %v546
        %661 = vmatprep.subr.mxu0 0.0
        %662 = vmatpush1.msra.mxu0 %v648
        %663 = vmatprep.subr.mxu0 0.0
        %664 = vmatpush1.msra.mxu0 0.0
        %665 = vmatprep.subr.mxu0 0.0
        %666 = vmatpush1.msra.mxu0 0.0
        %667 = vmatprep.subr.mxu0 0.0
        %668 = vmatpush1.msra.mxu0 0.0
        %669 = vmatprep.subr.mxu0 0.0
        %670 = vmatpush1.msra.mxu0 0.0
        %671 = vmatprep.subr.mxu0 0.0
        %672 = vmatpush1.msra.mxu0 0.0
        %673 = vmatprep.subr.mxu0 0.0
        %674 = vmatpush1.msra.mxu0 0.0
        %675 = vmatprep.subr.mxu0 0.0
        %676 = vmatpush1.msra.mxu0 0.0
        %677 = vmatprep.subr.mxu0 0.0
        %678 = vmatpush1.msra.mxu0 0.0
        %679 = vmatprep.subr.mxu0 0.0
        %680 = vmatpush1.msra.mxu0 0.0
        %681 = vmatprep.subr.mxu0 0.0
        %682 = vmatpush1.msra.mxu0 0.0
        %683 = vmatprep.subr.mxu0 0.0
        %684 = vmatpush1.msra.mxu0 0.0
        %685 = vmatprep.subr.mxu0 0.0
        %686 = vmatpush1.msra.mxu0 0.0
        %687 = vmatprep.subr.mxu0 0.0
        %688 = vmatpush1.msra.mxu0 0.0
        %689 = vmatprep.subr.mxu0 0.0
        %690 = vmatpush1.msra.mxu0 0.0
        %691 = vmatprep.subr.mxu0 0.0
        %692 = vmatpush1.msra.mxu0 0.0
        %693 = vmatprep.subr.mxu0 0.0
        %694 = vmatpush1.msra.mxu0 0.0
        %695 = vmatprep.subr.mxu0 0.0
        %696 = vmatpush1.msra.mxu0 0.0
        %697 = vmatprep.subr.mxu0 0.0
        %698 = vmatpush1.msra.mxu0 0.0
        %699 = vmatprep.subr.mxu0 0.0
        %700 = vmatpush1.msra.mxu0 0.0
        %701 = vmatprep.subr.mxu0 0.0
        %702 = vmatpush1.msra.mxu0 0.0
        %703 = vmatprep.subr.mxu0 0.0
        %704 = vmatpush1.msra.mxu0 0.0
        %705 = vmatprep.subr.mxu0 0.0
        %706 = vmatpush1.msra.mxu0 0.0
        %707 = vmatprep.subr.mxu0 0.0
        %708 = vmatpush1.msra.mxu0 0.0
        %709 = vmatprep.subr.mxu0 0.0
        %710 = vmatpush1.msra.mxu0 0.0
        %711 = vmatprep.subr.mxu0 0.0
        %712 = vmatpush1.msra.mxu0 0.0
        %713 = vmatprep.subr.mxu0 0.0
        %714 = vmatpush1.msra.mxu0 0.0
        %715 = vmatprep.subr.mxu0 0.0
        %716 = vmatpush1.msra.mxu0 0.0
        %717 = vmatprep.subr.mxu0 0.0
        %718 = vmatpush1.msra.mxu0 0.0
        %719 = vmatprep.subr.mxu0 0.0
        %720 = vmatpush1.msra.mxu0 0.0
        %721 = vmatprep.mubr.f32.mxu0 0.0
        %722 = vmatmul.mubr.f32.gmra.mrb[0].mxu0 %v655
        %v723 = vpop.f32.mrb[0].mxu0
        %v724 = vadd.f32 %v652, %v723
        %v725 = vpop.f32.mrb[0].mxu0
        %726 = vdwg.mxu0
        %v727 = vmax.f32 %v724, 0.0
        %s728 = scalar_lea.vmem %s1, 32
        %v729 = vld [vmem:[%s728] sm:$0xff]
        %s730 = scalar_lea.vmem %s2, 32
        %v731 = vld [vmem:[%s730] sm:$0xff]
        %vm732 = vcmp.ge.s32.totalorder %v229, 4
        %733 = vrot.lane.b32.xlu0 %v727, 16
        %v734 = vpop.permute.xlu0 %733
        %v735 = vsel %vm231, %v734, %v727
        %736 = vrot.lane.b32.xlu0 %v735, 16
        %v737 = vpop.permute.xlu0 %736
        %v738 = vsel %vm231, %v737, %v727
        %740 = vrot.lane.b32.xlu0 %v738, 116
        %v741 = vpop.permute.xlu0 %740
        %v743 = vsel %vm732, %v741, 0.0
        %vm744 = vcmp.lt.s32.totalorder %v229, 12
        %745 = vrot.lane.b32.xlu0 %v738, 124
        %v746 = vpop.permute.xlu0 %745
        %v748 = vsel %vm744, %v746, 0.0
        %750 = vset.pattern.permute.xlu0 0
        %751 = vperm.xlu0 %750, %v731
        %v752 = vpop.permute.xlu0 %751
        %v755 = vsel %vm373, %v729, 0
        %757 = vmatprep.subr.mxu0 0.0
        %758 = vmatpush1.msra.mxu0 %v743
        %759 = vmatprep.subr.mxu0 0.0
        %760 = vmatpush1.msra.mxu0 %v727
        %761 = vmatprep.subr.mxu0 0.0
        %762 = vmatpush1.msra.mxu0 %v748
        %763 = vmatprep.subr.mxu0 0.0
        %764 = vmatpush1.msra.mxu0 0.0
        %765 = vmatprep.subr.mxu0 0.0
        %766 = vmatpush1.msra.mxu0 0.0
        %767 = vmatprep.subr.mxu0 0.0
        %768 = vmatpush1.msra.mxu0 0.0
        %769 = vmatprep.subr.mxu0 0.0
        %770 = vmatpush1.msra.mxu0 0.0
        %771 = vmatprep.subr.mxu0 0.0
        %772 = vmatpush1.msra.mxu0 0.0
        %773 = vmatprep.subr.mxu0 0.0
        %774 = vmatpush1.msra.mxu0 0.0
        %775 = vmatprep.subr.mxu0 0.0
        %776 = vmatpush1.msra.mxu0 0.0
        %777 = vmatprep.subr.mxu0 0.0
        %778 = vmatpush1.msra.mxu0 0.0
        %779 = vmatprep.subr.mxu0 0.0
        %780 = vmatpush1.msra.mxu0 0.0
        %781 = vmatprep.subr.mxu0 0.0
        %782 = vmatpush1.msra.mxu0 0.0
        %783 = vmatprep.subr.mxu0 0.0
        %784 = vmatpush1.msra.mxu0 0.0
        %785 = vmatprep.subr.mxu0 0.0
        %786 = vmatpush1.msra.mxu0 0.0
        %787 = vmatprep.subr.mxu0 0.0
        %788 = vmatpush1.msra.mxu0 0.0
        %789 = vmatprep.subr.mxu0 0.0
        %790 = vmatpush1.msra.mxu0 0.0
        %791 = vmatprep.subr.mxu0 0.0
        %792 = vmatpush1.msra.mxu0 0.0
        %793 = vmatprep.subr.mxu0 0.0
        %794 = vmatpush1.msra.mxu0 0.0
        %795 = vmatprep.subr.mxu0 0.0
        %796 = vmatpush1.msra.mxu0 0.0
        %797 = vmatprep.subr.mxu0 0.0
        %798 = vmatpush1.msra.mxu0 0.0
        %799 = vmatprep.subr.mxu0 0.0
        %800 = vmatpush1.msra.mxu0 0.0
        %801 = vmatprep.subr.mxu0 0.0
        %802 = vmatpush1.msra.mxu0 0.0
        %803 = vmatprep.subr.mxu0 0.0
        %804 = vmatpush1.msra.mxu0 0.0
        %805 = vmatprep.subr.mxu0 0.0
        %806 = vmatpush1.msra.mxu0 0.0
        %807 = vmatprep.subr.mxu0 0.0
        %808 = vmatpush1.msra.mxu0 0.0
        %809 = vmatprep.subr.mxu0 0.0
        %810 = vmatpush1.msra.mxu0 0.0
        %811 = vmatprep.subr.mxu0 0.0
        %812 = vmatpush1.msra.mxu0 0.0
        %813 = vmatprep.subr.mxu0 0.0
        %814 = vmatpush1.msra.mxu0 0.0
        %815 = vmatprep.subr.mxu0 0.0
        %816 = vmatpush1.msra.mxu0 0.0
        %817 = vmatprep.subr.mxu0 0.0
        %818 = vmatpush1.msra.mxu0 0.0
        %819 = vmatprep.subr.mxu0 0.0
        %820 = vmatpush1.msra.mxu0 0.0
        %821 = vmatprep.mubr.f32.mxu0 0.0
        %822 = vmatmul.mubr.f32.gmra.mrb[0].mxu0 %v755
        %v823 = vpop.f32.mrb[0].mxu0
        %v824 = vadd.f32 %v752, %v823
        %v825 = vpop.f32.mrb[0].mxu0
        %826 = vdwg.mxu0
        %v827 = vadd.f32 %v824, %v627
        %v828 = vmax.f32 %v827, 0.0
        %v829 = vld [vmem:[%s3] sm:$0xff]
        %v830 = vld [vmem:[%s3 + $0x8] sm:$0xff]
        %vm831 = vcmask 130048
        %v833 = vsel %vm831, %v828, 0
        %835 = vmatprep.subr.mxu0 0.0
        %836 = vmatpush1.msra.mxu0 %v829
        %837 = vmatprep.subr.mxu0 0.0
        %838 = vmatpush1.msra.mxu0 %v830
        %839 = vmatprep.subr.mxu0 0.0
        %840 = vmatpush1.msra.mxu0 0.0
        %841 = vmatprep.subr.mxu0 0.0
        %842 = vmatpush1.msra.mxu0 0.0
        %843 = vmatprep.subr.mxu0 0.0
        %844 = vmatpush1.msra.mxu0 0.0
        %845 = vmatprep.subr.mxu0 0.0
        %846 = vmatpush1.msra.mxu0 0.0
        %847 = vmatprep.subr.mxu0 0.0
        %848 = vmatpush1.msra.mxu0 0.0
        %849 = vmatprep.subr.mxu0 0.0
        %850 = vmatpush1.msra.mxu0 0.0
        %851 = vmatprep.subr.mxu0 0.0
        %852 = vmatpush1.msra.mxu0 0.0
        %853 = vmatprep.subr.mxu0 0.0
        %854 = vmatpush1.msra.mxu0 0.0
        %855 = vmatprep.subr.mxu0 0.0
        %856 = vmatpush1.msra.mxu0 0.0
        %857 = vmatprep.subr.mxu0 0.0
        %858 = vmatpush1.msra.mxu0 0.0
        %859 = vmatprep.subr.mxu0 0.0
        %860 = vmatpush1.msra.mxu0 0.0
        %861 = vmatprep.subr.mxu0 0.0
        %862 = vmatpush1.msra.mxu0 0.0
        %863 = vmatprep.subr.mxu0 0.0
        %864 = vmatpush1.msra.mxu0 0.0
        %865 = vmatprep.subr.mxu0 0.0
        %866 = vmatpush1.msra.mxu0 0.0
        %867 = vmatprep.subr.mxu0 0.0
        %868 = vmatpush1.msra.mxu0 0.0
        %869 = vmatprep.subr.mxu0 0.0
        %870 = vmatpush1.msra.mxu0 0.0
        %871 = vmatprep.subr.mxu0 0.0
        %872 = vmatpush1.msra.mxu0 0.0
        %873 = vmatprep.subr.mxu0 0.0
        %874 = vmatpush1.msra.mxu0 0.0
        %875 = vmatprep.subr.mxu0 0.0
        %876 = vmatpush1.msra.mxu0 0.0
        %877 = vmatprep.subr.mxu0 0.0
        %878 = vmatpush1.msra.mxu0 0.0
        %879 = vmatprep.subr.mxu0 0.0
        %880 = vmatpush1.msra.mxu0 0.0
        %881 = vmatprep.subr.mxu0 0.0
        %882 = vmatpush1.msra.mxu0 0.0
        %883 = vmatprep.subr.mxu0 0.0
        %884 = vmatpush1.msra.mxu0 0.0
        %885 = vmatprep.subr.mxu0 0.0
        %886 = vmatpush1.msra.mxu0 0.0
        %887 = vmatprep.subr.mxu0 0.0
        %888 = vmatpush1.msra.mxu0 0.0
        %889 = vmatprep.subr.mxu0 0.0
        %890 = vmatpush1.msra.mxu0 0.0
        %891 = vmatprep.subr.mxu0 0.0
        %892 = vmatpush1.msra.mxu0 0.0
        %893 = vmatprep.subr.mxu0 0.0
        %894 = vmatpush1.msra.mxu0 0.0
        %895 = vmatprep.subr.mxu0 0.0
        %896 = vmatpush1.msra.mxu0 0.0
        %897 = vmatprep.subr.mxu0 0.0
        %898 = vmatpush1.msra.mxu0 0.0
        %899 = vmatprep.mubr.f32.mxu0 0.0
        %900 = vmatmul.mubr.f32.gmra.mrb[0].mxu0 %v833
        %v901 = vpop.f32.mrb[0].mxu0
        %v902 = vadd.f32 0.0, %v901
        %v903 = vpop.f32.mrb[0].mxu0
        %904 = vdwg.mxu0
        %vm905 = vcmask 7168
        %906 = vst.msk [vmem:[%s212] sm:$0xff] %vm905, %v902
        %p907 = scmp.lt.s32.totalorder %s18, 1
        %s908 = scalar_select %p907, %s18, 1
        %s909 = smul.addr %s908, 8
        %s910 = scalar_lea.vmem %s4, %s909
        // Predicated region
        $region41: #{forward.1} parent=35 // pred_check
          %p911 = pneg %p125
        $region42: #{forward.1} parent=35 // pred_check_branch
          %913 = sbr.rel (%p911) target = $region44
        $region43: #{forward.1} parent=35 // pred_region
          _
        $region44: #{forward.1} parent=35 // pred_fallthru
          _
      $region36: #{forward.1} parent=5 // pred_fallthru
        _
      %p914 = scmp.le.s32.totalorder 2, %s13
      // Predicated region
      $region45: #{forward.1} parent=5 // pred_check
        %p915 = pneg %p914
      $region46: #{forward.1} parent=5 // pred_check_branch
        %917 = sbr.rel (%p915) target = $region48
      $region47: #{forward.1} parent=5 // pred_region
        %s918 = ssub.s32 %s13, 2
        // Predicated region
        $region49: #{forward.1} parent=47 // pred_check
          %p919 = pneg %p131
        $region50: #{forward.1} parent=47 // pred_check_branch
          %921 = sbr.rel (%p919) target = $region52
        $region51: #{forward.1} parent=47 // pred_region
          %p922 = scmp.lt.s32.totalorder %s19, 1
          %s923 = scalar_select %p922, %s19, 1
          %s924 = smul.addr %s923, 8
          %s925 = scalar_lea.vmem %s4, %s924
        $region52: #{forward.1} parent=47 // pred_fallthru
          _
      $region48: #{forward.1} parent=5 // pred_fallthru
        _
    $region6: #{forward.1} parent=1 // loop_footer
      %s17 = sadd.s32 1, %s13
    $region7: #{forward.1} parent=1 // loop_footer_branch
      %12 = sbr.rel target = $region3
    $region8: #{forward.1} parent=1 // loop_exit
      _
    %926 = vsyncpa [#allocation3], 1
    %s927 = scalar_lea.sflag [#allocation3], 1
    %928 = vsyncpa %s927, 1

</llo_original>
